<compile_context>
chip_gen: v7x
topology: tpu7x:2x2x1
jax: 0.10.0
libtpu: 0.0.40
codegen_flags: <defaults>
</compile_context>

<pallas_src>
import functools

import jax
import jax.numpy as jnp
from jax.experimental import pallas as pl
from jax.experimental.pallas import tpu as pltpu

THRESHOLD = 0.2                      # matches BerhuLoss(threshold=0.2)
LANES = 128
DEFAULT_TILE_BYTES = 4 * 1024 * 1024  # per input, per pipeline buffer (~8192 f32 rows)
VMEM_LIMIT_BYTES = 32 * 1024 * 1024   # 2 inputs x 2 buffers x 4 MiB + headroom; OK on v5e/v6e/v7x


def _validity_mask(tile_rows, tile_index, true_n):
    """Mask of elements whose global flat index < true_n (handles ragged last block).

    Assumes true_n < 2**31 (int32 index arithmetic)."""
    base = tile_index * (tile_rows * LANES)
    row = jax.lax.broadcasted_iota(jnp.int32, (tile_rows, LANES), 0)
    lane = jax.lax.broadcasted_iota(jnp.int32, (tile_rows, LANES), 1)
    return (base + row * LANES + lane) < true_n


def _fused_single_tile_kernel(pred_ref, target_ref, out_ref, *, threshold, inv_n):
    # Whole problem resident in VMEM: one HBM read, max + sum fused.
    diff = jnp.abs(target_ref[...].astype(jnp.float32)
                   - pred_ref[...].astype(jnp.float32))
    # (Any zero padding added by the wrapper has diff == 0 and contributes 0 below.)
    dmax = jnp.max(diff)
    d = threshold * dmax
    d_sq = d * d
    inv_2d = 0.5 / d                                   # single divide; unused if d == 0
    big = (diff * diff + d_sq) * inv_2d
    part = jnp.where(diff < d, diff, jnp.where(diff > d, big, 0.0))
    total = jnp.sum(part)
    # delta == 0 (pred == target everywhere, for threshold > 0) -> PyTorch yields NaN (0/0).
    loss = jnp.where(d > 0, total * inv_n, jnp.float32(jnp.nan))
    out_ref[...] = loss.reshape(1, 1)


def _partial_max_kernel(pred_ref, target_ref, out_ref, *, tile_rows, true_n, apply_mask):
    diff = jnp.abs(target_ref[...].astype(jnp.float32)
                   - pred_ref[...].astype(jnp.float32))
    if apply_mask:
        diff = jnp.where(_validity_mask(tile_rows, pl.program_id(0), true_n), diff, 0.0)
    # Collapse to an (8,128) vreg-shaped partial max (pure VPU; cross-lane max done in wrapper).
    out_ref[...] = jnp.max(diff.reshape(tile_rows // 8, 8, LANES), axis=0)


def _partial_sum_kernel(delta_ref, pred_ref, target_ref, out_ref, *,
                        tile_rows, true_n, apply_mask):
    d = delta_ref[...]                                 # (1,1), broadcasts
    diff = jnp.abs(target_ref[...].astype(jnp.float32)
                   - pred_ref[...].astype(jnp.float32))
    if apply_mask:
        diff = jnp.where(_validity_mask(tile_rows, pl.program_id(0), true_n), diff, 0.0)
    d_sq = d * d                                       # (1,1) scalars, once per tile
    inv_2d = 0.5 / d                                   # inf when d == 0; wrapper handles that case
    big = (diff * diff + d_sq) * inv_2d
    # Fused nested select: diff if diff<d, (diff^2+d^2)/(2d) if diff>d, else 0 (incl. diff==d).
    part = jnp.where(diff < d, diff, jnp.where(diff > d, big, 0.0))
    out_ref[...] = jnp.sum(part.reshape(tile_rows // 8, 8, LANES), axis=0)


def berhu_loss(pred, target, threshold=THRESHOLD, tile_bytes=DEFAULT_TILE_BYTES):
    assert pred.shape == target.shape, "inconsistent dimensions"
    n = pred.size
    assert n > 0

    if pred.dtype != target.dtype:
        ct = jnp.promote_types(pred.dtype, target.dtype)
        pred = pred.astype(ct)
        target = target.astype(ct)

    p_flat = pred.reshape(-1)
    t_flat = target.reshape(-1)

    rows = (n + LANES - 1) // LANES
    itemsize = jnp.dtype(pred.dtype).itemsize
    # dtype-aware tile rows: keep ~tile_bytes of DMA per input per grid step.
    tile_rows_cap = max(8, (tile_bytes // (LANES * itemsize)) // 8 * 8)
    tile_rows = min(tile_rows_cap, ((rows + 7) // 8) * 8)
    num_tiles = (rows + tile_rows - 1) // tile_rows

    # Reshape for free when lane-aligned; otherwise pad by < 128 elements to the next
    # multiple of 128 (small, but still a copy).
    # TODO(synk): avoid this copy by handling the <128-element tail in plain JAX.
    rem = n % LANES
    if rem:
        pad = LANES - rem
        p_flat = jnp.pad(p_flat, (0, pad))
        t_flat = jnp.pad(t_flat, (0, pad))
    p2 = p_flat.reshape(rows, LANES)
    t2 = t_flat.reshape(rows, LANES)

    cparams = pltpu.CompilerParams(
        dimension_semantics=("parallel",),
        vmem_limit_bytes=VMEM_LIMIT_BYTES,
    )

    if num_tiles == 1:
        # Fast path: single resident tile, one HBM read, one launch.
        kernel = functools.partial(_fused_single_tile_kernel,
                                   threshold=float(threshold), inv_n=1.0 / float(n))
        out = pl.pallas_call(
            kernel,
            out_shape=jax.ShapeDtypeStruct((1, 1), jnp.float32),
            grid=(1,),
            in_specs=[pl.BlockSpec((rows, LANES), lambda i: (0, 0)),
                      pl.BlockSpec((rows, LANES), lambda i: (0, 0))],
            out_specs=pl.BlockSpec((1, 1), lambda i: (0, 0)),
            compiler_params=cparams,
        )(p2, t2)
        return out[0, 0]

    # Streaming path: two parallel-grid passes with lane-dense partial outputs.
    apply_mask = (num_tiles * tile_rows * LANES != n)

    max_kernel = functools.partial(_partial_max_kernel, tile_rows=tile_rows,
                                   true_n=n, apply_mask=apply_mask)
    partial_max = pl.pallas_call(
        max_kernel,
        out_shape=jax.ShapeDtypeStruct((num_tiles * 8, LANES), jnp.float32),
        grid=(num_tiles,),
        in_specs=[pl.BlockSpec((tile_rows, LANES), lambda i: (i, 0)),
                  pl.BlockSpec((tile_rows, LANES), lambda i: (i, 0))],
        out_specs=pl.BlockSpec((8, LANES), lambda i: (i, 0)),
        compiler_params=cparams,
    )(p2, t2)

    delta = jnp.float32(threshold) * jnp.max(partial_max)

    sum_kernel = functools.partial(_partial_sum_kernel, tile_rows=tile_rows,
                                   true_n=n, apply_mask=apply_mask)
    partial_sum = pl.pallas_call(
        sum_kernel,
        out_shape=jax.ShapeDtypeStruct((num_tiles * 8, LANES), jnp.float32),
        grid=(num_tiles,),
        in_specs=[pl.BlockSpec((1, 1), lambda i: (0, 0)),
                  pl.BlockSpec((tile_rows, LANES), lambda i: (i, 0)),
                  pl.BlockSpec((tile_rows, LANES), lambda i: (i, 0))],
        out_specs=pl.BlockSpec((8, LANES), lambda i: (i, 0)),
        compiler_params=cparams,
    )(delta.reshape(1, 1), p2, t2)

    total = jnp.sum(partial_sum)
    # delta == 0 <=> pred == target everywhere (threshold > 0): PyTorch yields NaN.
    return jnp.where(delta > 0, total / n, jnp.float32(jnp.nan))


def berhu_loss_ref(pred, target, threshold=THRESHOLD):
    # Pure-JAX reference mirroring the PyTorch module exactly.
    pred = pred.astype(jnp.float32)
    target = target.astype(jnp.float32)
    diff = jnp.abs(target - pred)
    delta = threshold * jnp.max(diff)
    part1 = jnp.where(diff < delta, diff, 0.0)
    sq = diff * diff + delta * delta
    part2 = jnp.where(sq > 2.0 * delta * delta, sq, 0.0) / (2.0 * delta)
    return jnp.mean(part1 + part2)


if __name__ == "__main__":
    key = jax.random.PRNGKey(0)
    kp, kt = jax.random.split(key)

    # 1) Small NCHW inputs (lane-aligned, n = 2048) -> fused single-tile fast path.
    pred = jax.random.uniform(kp, (2, 4, 16, 16), dtype=jnp.float32)
    target = jax.random.uniform(kt, (2, 4, 16, 16), dtype=jnp.float32)
    loss = berhu_loss(pred, target)
    jax.block_until_ready(loss)
    ref = berhu_loss_ref(pred, target)
    assert jnp.allclose(loss, ref, rtol=1e-5, atol=1e-6), (loss, ref)

    # 2) Lane-unaligned shape (n = 4845) -> tail-padded single-tile path.
    kp2, kt2 = jax.random.split(kt)
    pred2 = jax.random.uniform(kp2, (3, 5, 17, 19), dtype=jnp.float32)
    target2 = jax.random.uniform(kt2, (3, 5, 17, 19), dtype=jnp.float32)
    loss2 = berhu_loss(pred2, target2)
    jax.block_until_ready(loss2)
    ref2 = berhu_loss_ref(pred2, target2)
    assert jnp.allclose(loss2, ref2, rtol=1e-5, atol=1e-6), (loss2, ref2)

    # 3) Force the multi-tile streaming path (aligned, no mask) with a tiny tile budget.
    loss3 = berhu_loss(pred, target, tile_bytes=4 * 1024)
    jax.block_until_ready(loss3)
    assert jnp.allclose(loss3, ref, rtol=1e-5, atol=1e-6), (loss3, ref)

    # 4) Force the multi-tile streaming path with a ragged last block (mask exercised).
    loss4 = berhu_loss(pred2, target2, tile_bytes=8 * 1024)
    jax.block_until_ready(loss4)
    assert jnp.allclose(loss4, ref2, rtol=1e-5, atol=1e-6), (loss4, ref2)

    print("KERNEL_OK")
</pallas_src>

<mosaic_0001>
module attributes {stable_mosaic.version = 11 : i64} {
  func.func @_fused_single_tile_kernel(%arg0: i32, %arg1: memref<16x128xf32, #tpu.memory_space<vmem>>, %arg2: memref<16x128xf32, #tpu.memory_space<vmem>>, %arg3: memref<1x1xf32, #tpu.memory_space<vmem>>) attributes {dimension_semantics = [#tpu.dimension_semantics<parallel>], iteration_bounds = array<i64: 1>, scalar_prefetch = 0 : i64, scratch_operands = 0 : i64, tpu.core_type = #tpu.core_type<tc>, window_params = [{pipeline_mode = #tpu.pipeline_mode<synchronous>, transform_indices = @transform_0, window_bounds = array<i64: 16, 128>}, {pipeline_mode = #tpu.pipeline_mode<synchronous>, transform_indices = @transform_1, window_bounds = array<i64: 16, 128>}, {pipeline_mode = #tpu.pipeline_mode<synchronous>, transform_indices = @transform_2, window_bounds = array<i64: 1, 1>}]} {
    %c0 = arith.constant 0 : index
    %c0_0 = arith.constant 0 : index
    %0 = vector.load %arg2[%c0, %c0_0] : memref<16x128xf32, #tpu.memory_space<vmem>>, vector<16x128xf32>
    %c0_1 = arith.constant 0 : index
    %c0_2 = arith.constant 0 : index
    %1 = vector.load %arg1[%c0_1, %c0_2] : memref<16x128xf32, #tpu.memory_space<vmem>>, vector<16x128xf32>
    %2 = arith.subf %0, %1 : vector<16x128xf32>
    %3 = math.absf %2 : vector<16x128xf32>
    %4 = vector.shape_cast %3 : vector<16x128xf32> to vector<1x16x128xf32>
    %cst = arith.constant dense<0xFF800000> : vector<1xf32>
    %5 = vector.multi_reduction <maximumf>, %4, %cst [1, 2] : vector<1x16x128xf32> to vector<1xf32>
    %6 = vector.shape_cast %5 : vector<1xf32> to vector<1x1x1xf32>
    %7 = vector.extract %6[0, 0, 0] : f32 from vector<1x1x1xf32>
    %cst_3 = arith.constant 2.000000e-01 : f32
    %8 = arith.mulf %cst_3, %7 : f32
    %9 = arith.mulf %8, %8 : f32
    %cst_4 = arith.constant 5.000000e-01 : f32
    %10 = arith.divf %cst_4, %8 : f32
    %11 = arith.mulf %3, %3 : vector<16x128xf32>
    %12 = vector.broadcast %9 : f32 to vector<16x128xf32>
    %13 = arith.addf %11, %12 : vector<16x128xf32>
    %14 = vector.broadcast %10 : f32 to vector<16x128xf32>
    %15 = arith.mulf %13, %14 : vector<16x128xf32>
    %16 = vector.broadcast %8 : f32 to vector<16x128xf32>
    %17 = arith.cmpf olt, %3, %16 : vector<16x128xf32>
    %18 = vector.broadcast %8 : f32 to vector<16x128xf32>
    %19 = arith.cmpf ogt, %3, %18 : vector<16x128xf32>
    %cst_5 = arith.constant 0.000000e+00 : f32
    %20 = vector.broadcast %cst_5 : f32 to vector<16x128xf32>
    %21 = arith.select %19, %15, %20 : vector<16x128xi1>, vector<16x128xf32>
    %22 = arith.select %17, %3, %21 : vector<16x128xi1>, vector<16x128xf32>
    %23 = vector.shape_cast %22 : vector<16x128xf32> to vector<1x16x128xf32>
    %cst_6 = arith.constant dense<0.000000e+00> : vector<1xf32>
    %24 = vector.multi_reduction <add>, %23, %cst_6 [1, 2] : vector<1x16x128xf32> to vector<1xf32>
    %25 = vector.shape_cast %24 : vector<1xf32> to vector<1x1x1xf32>
    %26 = vector.extract %25[0, 0, 0] : f32 from vector<1x1x1xf32>
    %cst_7 = arith.constant 0.000000e+00 : f32
    %27 = arith.cmpf ogt, %8, %cst_7 : f32
    %cst_8 = arith.constant 4.8828125E-4 : f32
    %28 = arith.mulf %26, %cst_8 : f32
    %cst_9 = arith.constant 0x7FC00000 : f32
    %29 = arith.select %27, %28, %cst_9 : f32
    %30 = vector.broadcast %29 : f32 to vector<1x1xf32>
    %c0_10 = arith.constant 0 : index
    %c0_11 = arith.constant 0 : index
    %31 = vector.load %arg3[%c0_10, %c0_11] : memref<1x1xf32, #tpu.memory_space<vmem>>, vector<1x1xf32>
    tpu.vector_store %arg3[%c0_10, %c0_11], %30 {strides = array<i32>} : memref<1x1xf32, #tpu.memory_space<vmem>>, vector<1x1xf32>,
    return
  }
  func.func @transform_0(%arg0: i32) -> (i32, i32) {
    %c0_i32 = arith.constant 0 : i32
    %c0_i32_0 = arith.constant 0 : i32
    %c0_i32_1 = arith.constant 0 : i32
    return %c0_i32, %c0_i32_0 : i32, i32
  }
  func.func @transform_1(%arg0: i32) -> (i32, i32) {
    %c0_i32 = arith.constant 0 : i32
    %c0_i32_0 = arith.constant 0 : i32
    %c0_i32_1 = arith.constant 0 : i32
    return %c0_i32, %c0_i32_0 : i32, i32
  }
  func.func @transform_2(%arg0: i32) -> (i32, i32) {
    %c0_i32 = arith.constant 0 : i32
    %c0_i32_0 = arith.constant 0 : i32
    %c0_i32_1 = arith.constant 0 : i32
    return %c0_i32, %c0_i32_0 : i32, i32
  }
}

</mosaic_0001>

<llo_original>
// kernel: tpu_custom_call.1
$region0: #{tpu_custom_call.1}
  #allocation0 [shape = 'u32[]', space=smem, size = 0x4, offset = 0x4, fixed_abs, tag = 'smem constant byte address 0x4 - core index']
  #allocation1 [shape = 'u32[144,128]{1,0:T(1,128)}', space=vmem, size = 0x12000, scoped, tag = 'internal scratch']
  %s0 = inlined_call_operand.hbm [shape: f32[16,128], index: 0, kind: input, shape index: {}]
  %s1 = inlined_call_operand.hbm [shape: f32[16,128], index: 1, kind: input, shape index: {}]
  %s2 = inlined_call_operand.hbm [shape: f32[1,1], index: 2, kind: output, shape index: {}]
  %s3 = sld [smem:[#allocation0]]
  $region26: #{tpu_custom_call.1} parent=0
    _
  %s5 = ssub.s32 1, %s3
  %s6 = scalar_select 0, %s5, %s3
  $region1: #{tpu_custom_call.1} parent=0
    #allocation2 [shape = 'u8[8192]{0}', space=vmem, size = 0x2000, scoped, tag = 'input window, operand 0, single buffered']
    #allocation3 [shape = 's32[1]{0}', space=sflag, size = 0x4, scoped, tag = 'scoped memory for tpu_custom_call.1']
    #allocation4 [shape = 's32[1]{0}', space=sflag, size = 0x4, scoped, tag = 'scoped memory for tpu_custom_call.1']
    #allocation5 [shape = 'u8[8192]{0}', space=vmem, size = 0x2000, scoped, tag = 'input window, operand 1, single buffered']
    #allocation6 [shape = 's32[1]{0}', space=sflag, size = 0x4, scoped, tag = 'scoped memory for tpu_custom_call.1']
    #allocation7 [shape = 'u8[512]{0}', space=vmem, size = 0x400, scoped, tag = 'output window, operand 0, single buffered']
    %7 = vsyncpa [#allocation3], 0
    %8 = vsyncpa [#allocation6], 0
    %9 = vsyncpa [#allocation4], 0
    // Predicated region
    $region2: #{tpu_custom_call.1} parent=1 // pred_check
      _
    $region3: #{tpu_custom_call.1} parent=1 // pred_check_branch
      %11 = sbr.rel (0) target = $region5
    $region4: #{tpu_custom_call.1} parent=1 // pred_region
      %s13 = ssub.s32 256, 256
      %14 = vsyncadd [#allocation3], %s13
      %s15 = sshll.u32 [#allocation2], 4
      %s16 = int_to_ptr.vmem [resolvable:$true] %s15
      %21 = dma.hbm_to_vmem [thread:$0]  %s0, 256, %s16, [#allocation3], 128, 128, 8
    $region5: #{tpu_custom_call.1} parent=1 // pred_fallthru
      _
    // Predicated region
    $region6: #{tpu_custom_call.1} parent=1 // pred_check
      _
    $region7: #{tpu_custom_call.1} parent=1 // pred_check_branch
      %23 = sbr.rel (0) target = $region9
    $region8: #{tpu_custom_call.1} parent=1 // pred_region
      %s25 = ssub.s32 256, 256
      %26 = vsyncadd [#allocation6], %s25
      %s27 = sshll.u32 [#allocation5], 4
      %s28 = int_to_ptr.vmem [resolvable:$true] %s27
      %33 = dma.hbm_to_vmem [thread:$0]  %s1, 256, %s28, [#allocation6], 128, 128, 8
    $region9: #{tpu_custom_call.1} parent=1 // pred_fallthru
      _
    // Predicated region
    $region10: #{tpu_custom_call.1} parent=1 // pred_check
      _
    $region11: #{tpu_custom_call.1} parent=1 // pred_check_branch
      %35 = sbr.rel (0) target = $region13
    $region12: #{tpu_custom_call.1} parent=1 // pred_region
      %36 = dma.done [#allocation3], 256
    $region13: #{tpu_custom_call.1} parent=1 // pred_fallthru
      _
    // Predicated region
    $region14: #{tpu_custom_call.1} parent=1 // pred_check
      _
    $region15: #{tpu_custom_call.1} parent=1 // pred_check_branch
      %38 = sbr.rel (0) target = $region17
    $region16: #{tpu_custom_call.1} parent=1 // pred_region
      %39 = dma.done [#allocation6], 256
    $region17: #{tpu_custom_call.1} parent=1 // pred_fallthru
      _
    %v40 = vld [vmem:[#allocation5] sm:$0xff]
    %v41 = vld [vmem:[#allocation5 + $0x8] sm:$0xff]
    %v42 = vld [vmem:[#allocation2] sm:$0xff]
    %v43 = vld [vmem:[#allocation2 + $0x8] sm:$0xff]
    %v44 = vsub.f32 %v40, %v42
    %v45 = vsub.f32 %v41, %v43
    %v46 = vand.u32 2147483647, %v44
    %v47 = vand.u32 2147483647, %v45
    %v48 = vmax.f32 %v46, %v47
    %49 = vmax.xlane.f32.xlu0 %v48
    %v50 = vpop.xlane.xlu0 %49
    %v51 = vrot.slane %v50, 4
    %v52 = vmax.f32 %v50, %v51
    %v53 = vrot.slane %v52, 2
    %v54 = vmax.f32 %v52, %v53
    %v55 = vrot.slane %v54, 1
    %v56 = vmax.f32 %v54, %v55
    %s57 = vtos %v56
    %s58 = smul.f32 %s57, 0.2
    %s59 = smul.f32 %s58, %s58
    %v60 = vstv %s58
    %v61 = vrcp.pop %v60
    %s62 = vtos %v61
    %s63 = smul.f32 0.5, %s62
    %v64 = vmul.f32 %v46, %v46
    %v65 = vmul.f32 %v47, %v47
    %v66 = vstv %s59
    %v67 = vadd.f32 %v64, %v66
    %v68 = vadd.f32 %v65, %v66
    %v69 = vstv %s63
    %v70 = vmul.f32 %v67, %v69
    %v71 = vmul.f32 %v68, %v69
    %v72 = vstv %s58
    %vm73 = vcmp.lt.f32.partialorder %v46, %v72
    %vm74 = vcmp.lt.f32.partialorder %v47, %v72
    %vm75 = vcmp.gt.f32.partialorder %v46, %v72
    %vm76 = vcmp.gt.f32.partialorder %v47, %v72
    %v77 = vsel %vm75, %v70, 0.0
    %v78 = vsel %vm76, %v71, 0.0
    %v79 = vsel %vm73, %v46, %v77
    %v80 = vsel %vm74, %v47, %v78
    %v81 = vadd.f32 %v79, %v80
    %82 = vadd.xlane.f32.xlu0 %v81
    %v83 = vpop.xlane.xlu0 %82
    %v84 = vrot.slane %v83, 4
    %v85 = vadd.f32 %v83, %v84
    %v86 = vrot.slane %v85, 2
    %v87 = vadd.f32 %v85, %v86
    %v88 = vrot.slane %v87, 1
    %v89 = vadd.f32 %v87, %v88
    %s90 = vtos %v89
    %p91 = scmp.gt.f32.partialorder %s58, 0.0
    %s92 = smul.f32 %s90, 0.00048828125
    %s93 = scalar_select %p91, %s92, nan
    %v94 = vstv %s93
    %vm95 = vcmask 0
    %96 = vst.msk [vmem:[#allocation7] sm:$0x1] %vm95, %v94
    // Predicated region
    $region18: #{tpu_custom_call.1} parent=1 // pred_check
      _
    $region19: #{tpu_custom_call.1} parent=1 // pred_check_branch
      %98 = sbr.rel (0) target = $region21
    $region20: #{tpu_custom_call.1} parent=1 // pred_region
      %s100 = ssub.s32 16, 16
      %101 = vsyncadd [#allocation4], %s100
      %s103 = sshll.u32 [#allocation7], 4
      %s104 = int_to_ptr.vmem [resolvable:$true] %s103
      %106 = dma.vmem_to_hbm [thread:$0]  %s104, 16, %s2, [#allocation4]
    $region21: #{tpu_custom_call.1} parent=1 // pred_fallthru
      _
    // Predicated region
    $region22: #{tpu_custom_call.1} parent=1 // pred_check
      _
    $region23: #{tpu_custom_call.1} parent=1 // pred_check_branch
      %108 = sbr.rel (0) target = $region25
    $region24: #{tpu_custom_call.1} parent=1 // pred_region
      %109 = dma.done [#allocation4], 16
    $region25: #{tpu_custom_call.1} parent=1 // pred_fallthru
      _
    %110 = vsyncpa [#allocation3], 1
    %111 = vsyncpa [#allocation6], 1
    %112 = vsyncpa [#allocation4], 1

</llo_original>
